<compile_context>
chip_gen: v5e
topology: v5e:2x2
jax: 0.10.0
libtpu: 0.0.40
codegen_flags: <defaults>
</compile_context>

<pallas_src>
import math

import jax
import jax.numpy as jnp
from jax.experimental import pallas as pl
from jax.experimental.pallas import tpu as pltpu

D = 10            # input features
HIDD = 2          # hidden features
NEG_SLOPE = 0.01  # torch.nn.LeakyReLU default negative_slope
LANE = 128        # TPU lane width
SUB = 8           # TPU sublane width


def _leaky_relu(x):
    return jnp.where(x >= 0, x, NEG_SLOPE * x)


def _round_up(n, m):
    return ((n + m - 1) // m) * m


def mlp_kernel(w1_ref, b1_ref, w2_ref, b2_ref, w3_ref, b3_ref, x_ref, o_ref):
    """Fused 3-layer MLP on one (D, SUB, TILE_L) tile.

    Batch is packed densely on (sublane, lane); weights/biases are flat f32
    scalars in SMEM (scalar-prefetched).  Each tiny contraction (K=10/2,
    N=2/1) is unrolled as broadcast scalar-weight * vector multiply-adds on
    the VPU.
    """
    # Load each feature row exactly once; each is a dense (SUB, TILE_L) tile.
    x_rows = [x_ref[i] for i in range(D)]

    # Layer 1: D -> HIDD   (w1 flat row-major: w1[i, j] -> i * HIDD + j)
    h1 = []
    for j in range(HIDD):
        acc = x_rows[0] * w1_ref[j]
        for i in range(1, D):
            acc = acc + x_rows[i] * w1_ref[i * HIDD + j]
        h1.append(_leaky_relu(acc + b1_ref[j]))

    # Layer 2: HIDD -> HIDD
    h2 = []
    for j in range(HIDD):
        acc = h1[0] * w2_ref[j]
        for i in range(1, HIDD):
            acc = acc + h1[i] * w2_ref[i * HIDD + j]
        h2.append(_leaky_relu(acc + b2_ref[j]))

    # Layer 3: HIDD -> 1
    out = h2[0] * w3_ref[0]
    for i in range(1, HIDD):
        out = out + h2[i] * w3_ref[i]
    out = out + b3_ref[0]

    o_ref[...] = out.astype(o_ref.dtype)


def mlp_forward(x, params, *, tile_lanes=2048):
    """x: (B, D) float32 -> (B, 1) float32. Same math as torch's MLP.forward."""
    w1, b1, w2, b2, w3, b3 = params
    B, d_in = x.shape
    assert d_in == D, x.shape
    assert tile_lanes % LANE == 0

    # Put batch on (sublane, lane): (B, D) -> (D, B) -> (D, SUB, B/SUB),
    # padded so the lane axis is a whole number of lane-aligned tiles.
    xt = jnp.transpose(x.astype(jnp.float32))                  # (D, B)
    bp = _round_up(B, SUB * LANE)
    lanes_total = bp // SUB
    tile_l = min(tile_lanes, lanes_total)
    lanes_total = _round_up(lanes_total, tile_l)
    bp = lanes_total * SUB
    if bp != B:
        xt = jnp.pad(xt, ((0, 0), (0, bp - B)))
    x3 = xt.reshape(D, SUB, lanes_total)                        # batch b = s*lanes_total + l

    grid = (lanes_total // tile_l,)
    flat = lambda a: a.reshape(-1).astype(jnp.float32)

    out = pl.pallas_call(
        mlp_kernel,
        out_shape=jax.ShapeDtypeStruct((SUB, lanes_total), jnp.float32),
        grid_spec=pltpu.PrefetchScalarGridSpec(
            num_scalar_prefetch=6,                               # w1,b1,w2,b2,w3,b3 -> SMEM
            grid=grid,
            in_specs=[pl.BlockSpec((D, SUB, tile_l), lambda i, *_: (0, 0, i))],
            out_specs=pl.BlockSpec((SUB, tile_l), lambda i, *_: (0, i)),
        ),
        compiler_params=pltpu.CompilerParams(
            dimension_semantics=("parallel",),                   # megacore split on v7x
        ),
    )(
        flat(w1),   # (D*HIDD,)
        flat(b1),   # (HIDD,)
        flat(w2),   # (HIDD*HIDD,)
        flat(b2),   # (HIDD,)
        flat(w3),   # (HIDD,)
        flat(b3),   # (1,)
        x3,
    )
    return out.reshape(bp)[:B].reshape(B, 1)                    # (B, 1)


def init_params(key):
    """Deterministic init mirroring the torch module:
    weights: xavier_uniform; biases: U(-1/sqrt(fan_in), 1/sqrt(fan_in)).
    Weights are stored as (in_features, out_features) = W.T of torch."""
    ks = jax.random.split(key, 6)

    def xavier(k, fan_in, fan_out):
        limit = math.sqrt(6.0 / (fan_in + fan_out))
        return jax.random.uniform(k, (fan_in, fan_out), jnp.float32,
                                  minval=-limit, maxval=limit)

    def bias(k, fan_in, fan_out):
        limit = 1.0 / math.sqrt(fan_in)
        return jax.random.uniform(k, (1, fan_out), jnp.float32,
                                  minval=-limit, maxval=limit)

    w1 = xavier(ks[0], D, HIDD)
    b1 = bias(ks[1], D, HIDD)
    w2 = xavier(ks[2], HIDD, HIDD)
    b2 = bias(ks[3], HIDD, HIDD)
    w3 = xavier(ks[4], HIDD, 1)
    b3 = bias(ks[5], HIDD, 1)
    return (w1, b1, w2, b2, w3, b3)


def mlp_reference(x, params):
    """Pure-JAX reference for correctness checking."""
    w1, b1, w2, b2, w3, b3 = params
    hp = jax.lax.Precision.HIGHEST
    h = _leaky_relu(jnp.dot(x, w1, precision=hp) + b1)
    h = _leaky_relu(jnp.dot(h, w2, precision=hp) + b2)
    return jnp.dot(h, w3, precision=hp) + b3


if __name__ == "__main__":
    key = jax.random.PRNGKey(0)
    k_x, k_x2, k_p = jax.random.split(key, 3)
    params = init_params(k_p)

    # Small, torch-consistent shape: batch=8, features=10.
    batch = 8
    x = jax.random.normal(k_x, (batch, D), jnp.float32)
    out = jax.block_until_ready(mlp_forward(x, params))
    ref = mlp_reference(x, params)
    assert out.shape == (batch, 1), out.shape
    assert jnp.allclose(out, ref, atol=1e-4, rtol=1e-4), (out, ref)

    # Second check exercising a multi-step (pipelined) batch grid + padding.
    batch2 = 2500
    x2 = jax.random.normal(k_x2, (batch2, D), jnp.float32)
    out2 = jax.block_until_ready(mlp_forward(x2, params, tile_lanes=128))
    ref2 = mlp_reference(x2, params)
    assert out2.shape == (batch2, 1), out2.shape
    assert jnp.allclose(out2, ref2, atol=1e-4, rtol=1e-4)

    print("KERNEL_OK")
</pallas_src>

<mosaic_0001>
module attributes {stable_mosaic.version = 11 : i64} {
  func.func @mlp_kernel(%arg0: i32, %arg1: memref<20xf32, #tpu.memory_space<smem>>, %arg2: memref<2xf32, #tpu.memory_space<smem>>, %arg3: memref<4xf32, #tpu.memory_space<smem>>, %arg4: memref<2xf32, #tpu.memory_space<smem>>, %arg5: memref<2xf32, #tpu.memory_space<smem>>, %arg6: memref<1xf32, #tpu.memory_space<smem>>, %arg7: memref<10x8x128xf32, #tpu.memory_space<vmem>>, %arg8: memref<8x128xf32, #tpu.memory_space<vmem>>) attributes {dimension_semantics = [#tpu.dimension_semantics<parallel>], iteration_bounds = array<i64: 1>, scalar_prefetch = 6 : i64, scratch_operands = 0 : i64, tpu.core_type = #tpu.core_type<tc>, window_params = [{transform_indices = @transform_0, window_bounds = array<i64: 10, 8, 128>}, {transform_indices = @transform_1, window_bounds = array<i64: 8, 128>}]} {
    %c0 = arith.constant 0 : index
    %c0_0 = arith.constant 0 : index
    %c0_1 = arith.constant 0 : index
    %0 = vector.load %arg7[%c0, %c0_0, %c0_1] : memref<10x8x128xf32, #tpu.memory_space<vmem>>, vector<1x8x128xf32>
    %1 = vector.shape_cast %0 : vector<1x8x128xf32> to vector<8x128xf32>
    %c1 = arith.constant 1 : index
    %c0_2 = arith.constant 0 : index
    %c0_3 = arith.constant 0 : index
    %2 = vector.load %arg7[%c1, %c0_2, %c0_3] : memref<10x8x128xf32, #tpu.memory_space<vmem>>, vector<1x8x128xf32>
    %3 = vector.shape_cast %2 : vector<1x8x128xf32> to vector<8x128xf32>
    %c2 = arith.constant 2 : index
    %c0_4 = arith.constant 0 : index
    %c0_5 = arith.constant 0 : index
    %4 = vector.load %arg7[%c2, %c0_4, %c0_5] : memref<10x8x128xf32, #tpu.memory_space<vmem>>, vector<1x8x128xf32>
    %5 = vector.shape_cast %4 : vector<1x8x128xf32> to vector<8x128xf32>
    %c3 = arith.constant 3 : index
    %c0_6 = arith.constant 0 : index
    %c0_7 = arith.constant 0 : index
    %6 = vector.load %arg7[%c3, %c0_6, %c0_7] : memref<10x8x128xf32, #tpu.memory_space<vmem>>, vector<1x8x128xf32>
    %7 = vector.shape_cast %6 : vector<1x8x128xf32> to vector<8x128xf32>
    %c4 = arith.constant 4 : index
    %c0_8 = arith.constant 0 : index
    %c0_9 = arith.constant 0 : index
    %8 = vector.load %arg7[%c4, %c0_8, %c0_9] : memref<10x8x128xf32, #tpu.memory_space<vmem>>, vector<1x8x128xf32>
    %9 = vector.shape_cast %8 : vector<1x8x128xf32> to vector<8x128xf32>
    %c5 = arith.constant 5 : index
    %c0_10 = arith.constant 0 : index
    %c0_11 = arith.constant 0 : index
    %10 = vector.load %arg7[%c5, %c0_10, %c0_11] : memref<10x8x128xf32, #tpu.memory_space<vmem>>, vector<1x8x128xf32>
    %11 = vector.shape_cast %10 : vector<1x8x128xf32> to vector<8x128xf32>
    %c6 = arith.constant 6 : index
    %c0_12 = arith.constant 0 : index
    %c0_13 = arith.constant 0 : index
    %12 = vector.load %arg7[%c6, %c0_12, %c0_13] : memref<10x8x128xf32, #tpu.memory_space<vmem>>, vector<1x8x128xf32>
    %13 = vector.shape_cast %12 : vector<1x8x128xf32> to vector<8x128xf32>
    %c7 = arith.constant 7 : index
    %c0_14 = arith.constant 0 : index
    %c0_15 = arith.constant 0 : index
    %14 = vector.load %arg7[%c7, %c0_14, %c0_15] : memref<10x8x128xf32, #tpu.memory_space<vmem>>, vector<1x8x128xf32>
    %15 = vector.shape_cast %14 : vector<1x8x128xf32> to vector<8x128xf32>
    %c8 = arith.constant 8 : index
    %c0_16 = arith.constant 0 : index
    %c0_17 = arith.constant 0 : index
    %16 = vector.load %arg7[%c8, %c0_16, %c0_17] : memref<10x8x128xf32, #tpu.memory_space<vmem>>, vector<1x8x128xf32>
    %17 = vector.shape_cast %16 : vector<1x8x128xf32> to vector<8x128xf32>
    %c9 = arith.constant 9 : index
    %c0_18 = arith.constant 0 : index
    %c0_19 = arith.constant 0 : index
    %18 = vector.load %arg7[%c9, %c0_18, %c0_19] : memref<10x8x128xf32, #tpu.memory_space<vmem>>, vector<1x8x128xf32>
    %19 = vector.shape_cast %18 : vector<1x8x128xf32> to vector<8x128xf32>
    %c0_20 = arith.constant 0 : index
    %20 = memref.load %arg1[%c0_20] : memref<20xf32, #tpu.memory_space<smem>>
    %21 = vector.broadcast %20 : f32 to vector<8x128xf32>
    %22 = arith.mulf %1, %21 : vector<8x128xf32>
    %c2_21 = arith.constant 2 : index
    %23 = memref.load %arg1[%c2_21] : memref<20xf32, #tpu.memory_space<smem>>
    %24 = vector.broadcast %23 : f32 to vector<8x128xf32>
    %25 = arith.mulf %3, %24 : vector<8x128xf32>
    %26 = arith.addf %22, %25 : vector<8x128xf32>
    %c4_22 = arith.constant 4 : index
    %27 = memref.load %arg1[%c4_22] : memref<20xf32, #tpu.memory_space<smem>>
    %28 = vector.broadcast %27 : f32 to vector<8x128xf32>
    %29 = arith.mulf %5, %28 : vector<8x128xf32>
    %30 = arith.addf %26, %29 : vector<8x128xf32>
    %c6_23 = arith.constant 6 : index
    %31 = memref.load %arg1[%c6_23] : memref<20xf32, #tpu.memory_space<smem>>
    %32 = vector.broadcast %31 : f32 to vector<8x128xf32>
    %33 = arith.mulf %7, %32 : vector<8x128xf32>
    %34 = arith.addf %30, %33 : vector<8x128xf32>
    %c8_24 = arith.constant 8 : index
    %35 = memref.load %arg1[%c8_24] : memref<20xf32, #tpu.memory_space<smem>>
    %36 = vector.broadcast %35 : f32 to vector<8x128xf32>
    %37 = arith.mulf %9, %36 : vector<8x128xf32>
    %38 = arith.addf %34, %37 : vector<8x128xf32>
    %c10 = arith.constant 10 : index
    %39 = memref.load %arg1[%c10] : memref<20xf32, #tpu.memory_space<smem>>
    %40 = vector.broadcast %39 : f32 to vector<8x128xf32>
    %41 = arith.mulf %11, %40 : vector<8x128xf32>
    %42 = arith.addf %38, %41 : vector<8x128xf32>
    %c12 = arith.constant 12 : index
    %43 = memref.load %arg1[%c12] : memref<20xf32, #tpu.memory_space<smem>>
    %44 = vector.broadcast %43 : f32 to vector<8x128xf32>
    %45 = arith.mulf %13, %44 : vector<8x128xf32>
    %46 = arith.addf %42, %45 : vector<8x128xf32>
    %c14 = arith.constant 14 : index
    %47 = memref.load %arg1[%c14] : memref<20xf32, #tpu.memory_space<smem>>
    %48 = vector.broadcast %47 : f32 to vector<8x128xf32>
    %49 = arith.mulf %15, %48 : vector<8x128xf32>
    %50 = arith.addf %46, %49 : vector<8x128xf32>
    %c16 = arith.constant 16 : index
    %51 = memref.load %arg1[%c16] : memref<20xf32, #tpu.memory_space<smem>>
    %52 = vector.broadcast %51 : f32 to vector<8x128xf32>
    %53 = arith.mulf %17, %52 : vector<8x128xf32>
    %54 = arith.addf %50, %53 : vector<8x128xf32>
    %c18 = arith.constant 18 : index
    %55 = memref.load %arg1[%c18] : memref<20xf32, #tpu.memory_space<smem>>
    %56 = vector.broadcast %55 : f32 to vector<8x128xf32>
    %57 = arith.mulf %19, %56 : vector<8x128xf32>
    %58 = arith.addf %54, %57 : vector<8x128xf32>
    %c0_25 = arith.constant 0 : index
    %59 = memref.load %arg2[%c0_25] : memref<2xf32, #tpu.memory_space<smem>>
    %60 = vector.broadcast %59 : f32 to vector<8x128xf32>
    %61 = arith.addf %58, %60 : vector<8x128xf32>
    %cst = arith.constant 0.000000e+00 : f32
    %62 = vector.broadcast %cst : f32 to vector<8x128xf32>
    %63 = arith.cmpf oge, %61, %62 : vector<8x128xf32>
    %cst_26 = arith.constant 0.00999999977 : f32
    %64 = vector.broadcast %cst_26 : f32 to vector<8x128xf32>
    %65 = arith.mulf %64, %61 : vector<8x128xf32>
    %66 = arith.select %63, %61, %65 : vector<8x128xi1>, vector<8x128xf32>
    %c1_27 = arith.constant 1 : index
    %67 = memref.load %arg1[%c1_27] : memref<20xf32, #tpu.memory_space<smem>>
    %68 = vector.broadcast %67 : f32 to vector<8x128xf32>
    %69 = arith.mulf %1, %68 : vector<8x128xf32>
    %c3_28 = arith.constant 3 : index
    %70 = memref.load %arg1[%c3_28] : memref<20xf32, #tpu.memory_space<smem>>
    %71 = vector.broadcast %70 : f32 to vector<8x128xf32>
    %72 = arith.mulf %3, %71 : vector<8x128xf32>
    %73 = arith.addf %69, %72 : vector<8x128xf32>
    %c5_29 = arith.constant 5 : index
    %74 = memref.load %arg1[%c5_29] : memref<20xf32, #tpu.memory_space<smem>>
    %75 = vector.broadcast %74 : f32 to vector<8x128xf32>
    %76 = arith.mulf %5, %75 : vector<8x128xf32>
    %77 = arith.addf %73, %76 : vector<8x128xf32>
    %c7_30 = arith.constant 7 : index
    %78 = memref.load %arg1[%c7_30] : memref<20xf32, #tpu.memory_space<smem>>
    %79 = vector.broadcast %78 : f32 to vector<8x128xf32>
    %80 = arith.mulf %7, %79 : vector<8x128xf32>
    %81 = arith.addf %77, %80 : vector<8x128xf32>
    %c9_31 = arith.constant 9 : index
    %82 = memref.load %arg1[%c9_31] : memref<20xf32, #tpu.memory_space<smem>>
    %83 = vector.broadcast %82 : f32 to vector<8x128xf32>
    %84 = arith.mulf %9, %83 : vector<8x128xf32>
    %85 = arith.addf %81, %84 : vector<8x128xf32>
    %c11 = arith.constant 11 : index
    %86 = memref.load %arg1[%c11] : memref<20xf32, #tpu.memory_space<smem>>
    %87 = vector.broadcast %86 : f32 to vector<8x128xf32>
    %88 = arith.mulf %11, %87 : vector<8x128xf32>
    %89 = arith.addf %85, %88 : vector<8x128xf32>
    %c13 = arith.constant 13 : index
    %90 = memref.load %arg1[%c13] : memref<20xf32, #tpu.memory_space<smem>>
    %91 = vector.broadcast %90 : f32 to vector<8x128xf32>
    %92 = arith.mulf %13, %91 : vector<8x128xf32>
    %93 = arith.addf %89, %92 : vector<8x128xf32>
    %c15 = arith.constant 15 : index
    %94 = memref.load %arg1[%c15] : memref<20xf32, #tpu.memory_space<smem>>
    %95 = vector.broadcast %94 : f32 to vector<8x128xf32>
    %96 = arith.mulf %15, %95 : vector<8x128xf32>
    %97 = arith.addf %93, %96 : vector<8x128xf32>
    %c17 = arith.constant 17 : index
    %98 = memref.load %arg1[%c17] : memref<20xf32, #tpu.memory_space<smem>>
    %99 = vector.broadcast %98 : f32 to vector<8x128xf32>
    %100 = arith.mulf %17, %99 : vector<8x128xf32>
    %101 = arith.addf %97, %100 : vector<8x128xf32>
    %c19 = arith.constant 19 : index
    %102 = memref.load %arg1[%c19] : memref<20xf32, #tpu.memory_space<smem>>
    %103 = vector.broadcast %102 : f32 to vector<8x128xf32>
    %104 = arith.mulf %19, %103 : vector<8x128xf32>
    %105 = arith.addf %101, %104 : vector<8x128xf32>
    %c1_32 = arith.constant 1 : index
    %106 = memref.load %arg2[%c1_32] : memref<2xf32, #tpu.memory_space<smem>>
    %107 = vector.broadcast %106 : f32 to vector<8x128xf32>
    %108 = arith.addf %105, %107 : vector<8x128xf32>
    %cst_33 = arith.constant 0.000000e+00 : f32
    %109 = vector.broadcast %cst_33 : f32 to vector<8x128xf32>
    %110 = arith.cmpf oge, %108, %109 : vector<8x128xf32>
    %cst_34 = arith.constant 0.00999999977 : f32
    %111 = vector.broadcast %cst_34 : f32 to vector<8x128xf32>
    %112 = arith.mulf %111, %108 : vector<8x128xf32>
    %113 = arith.select %110, %108, %112 : vector<8x128xi1>, vector<8x128xf32>
    %c0_35 = arith.constant 0 : index
    %114 = memref.load %arg3[%c0_35] : memref<4xf32, #tpu.memory_space<smem>>
    %115 = vector.broadcast %114 : f32 to vector<8x128xf32>
    %116 = arith.mulf %66, %115 : vector<8x128xf32>
    %c2_36 = arith.constant 2 : index
    %117 = memref.load %arg3[%c2_36] : memref<4xf32, #tpu.memory_space<smem>>
    %118 = vector.broadcast %117 : f32 to vector<8x128xf32>
    %119 = arith.mulf %113, %118 : vector<8x128xf32>
    %120 = arith.addf %116, %119 : vector<8x128xf32>
    %c0_37 = arith.constant 0 : index
    %121 = memref.load %arg4[%c0_37] : memref<2xf32, #tpu.memory_space<smem>>
    %122 = vector.broadcast %121 : f32 to vector<8x128xf32>
    %123 = arith.addf %120, %122 : vector<8x128xf32>
    %cst_38 = arith.constant 0.000000e+00 : f32
    %124 = vector.broadcast %cst_38 : f32 to vector<8x128xf32>
    %125 = arith.cmpf oge, %123, %124 : vector<8x128xf32>
    %cst_39 = arith.constant 0.00999999977 : f32
    %126 = vector.broadcast %cst_39 : f32 to vector<8x128xf32>
    %127 = arith.mulf %126, %123 : vector<8x128xf32>
    %128 = arith.select %125, %123, %127 : vector<8x128xi1>, vector<8x128xf32>
    %c1_40 = arith.constant 1 : index
    %129 = memref.load %arg3[%c1_40] : memref<4xf32, #tpu.memory_space<smem>>
    %130 = vector.broadcast %129 : f32 to vector<8x128xf32>
    %131 = arith.mulf %66, %130 : vector<8x128xf32>
    %c3_41 = arith.constant 3 : index
    %132 = memref.load %arg3[%c3_41] : memref<4xf32, #tpu.memory_space<smem>>
    %133 = vector.broadcast %132 : f32 to vector<8x128xf32>
    %134 = arith.mulf %113, %133 : vector<8x128xf32>
    %135 = arith.addf %131, %134 : vector<8x128xf32>
    %c1_42 = arith.constant 1 : index
    %136 = memref.load %arg4[%c1_42] : memref<2xf32, #tpu.memory_space<smem>>
    %137 = vector.broadcast %136 : f32 to vector<8x128xf32>
    %138 = arith.addf %135, %137 : vector<8x128xf32>
    %cst_43 = arith.constant 0.000000e+00 : f32
    %139 = vector.broadcast %cst_43 : f32 to vector<8x128xf32>
    %140 = arith.cmpf oge, %138, %139 : vector<8x128xf32>
    %cst_44 = arith.constant 0.00999999977 : f32
    %141 = vector.broadcast %cst_44 : f32 to vector<8x128xf32>
    %142 = arith.mulf %141, %138 : vector<8x128xf32>
    %143 = arith.select %140, %138, %142 : vector<8x128xi1>, vector<8x128xf32>
    %c0_45 = arith.constant 0 : index
    %144 = memref.load %arg5[%c0_45] : memref<2xf32, #tpu.memory_space<smem>>
    %145 = vector.broadcast %144 : f32 to vector<8x128xf32>
    %146 = arith.mulf %128, %145 : vector<8x128xf32>
    %c1_46 = arith.constant 1 : index
    %147 = memref.load %arg5[%c1_46] : memref<2xf32, #tpu.memory_space<smem>>
    %148 = vector.broadcast %147 : f32 to vector<8x128xf32>
    %149 = arith.mulf %143, %148 : vector<8x128xf32>
    %150 = arith.addf %146, %149 : vector<8x128xf32>
    %c0_47 = arith.constant 0 : index
    %151 = memref.load %arg6[%c0_47] : memref<1xf32, #tpu.memory_space<smem>>
    %152 = vector.broadcast %151 : f32 to vector<8x128xf32>
    %153 = arith.addf %150, %152 : vector<8x128xf32>
    %c0_48 = arith.constant 0 : index
    %c0_49 = arith.constant 0 : index
    %154 = vector.load %arg8[%c0_48, %c0_49] : memref<8x128xf32, #tpu.memory_space<vmem>>, vector<8x128xf32>
    tpu.vector_store %arg8[%c0_48, %c0_49], %153 {strides = array<i32>} : memref<8x128xf32, #tpu.memory_space<vmem>>, vector<8x128xf32>,
    return
  }
  func.func @transform_0(%arg0: i32, %arg1: memref<20xf32, #tpu.memory_space<smem>>, %arg2: memref<2xf32, #tpu.memory_space<smem>>, %arg3: memref<4xf32, #tpu.memory_space<smem>>, %arg4: memref<2xf32, #tpu.memory_space<smem>>, %arg5: memref<2xf32, #tpu.memory_space<smem>>, %arg6: memref<1xf32, #tpu.memory_space<smem>>) -> (i32, i32, i32) {
    %c0_i32 = arith.constant 0 : i32
    %c0_i32_0 = arith.constant 0 : i32
    %c0_i32_1 = arith.constant 0 : i32
    return %c0_i32, %c0_i32_0, %arg0 : i32, i32, i32
  }
  func.func @transform_1(%arg0: i32, %arg1: memref<20xf32, #tpu.memory_space<smem>>, %arg2: memref<2xf32, #tpu.memory_space<smem>>, %arg3: memref<4xf32, #tpu.memory_space<smem>>, %arg4: memref<2xf32, #tpu.memory_space<smem>>, %arg5: memref<2xf32, #tpu.memory_space<smem>>, %arg6: memref<1xf32, #tpu.memory_space<smem>>) -> (i32, i32) {
    %c0_i32 = arith.constant 0 : i32
    %c0_i32_0 = arith.constant 0 : i32
    return %c0_i32, %arg0 : i32, i32
  }
}

</mosaic_0001>

<llo_original>
// kernel: tpu_custom_call.1
$region0: #{tpu_custom_call.1}
  #allocation0 [shape = 'u32[]', space=smem, size = 0x4, offset = 0x4, fixed_abs, tag = 'smem constant byte address 0x4 - core index']
  #allocation1 [shape = 'u32[72,128]{1,0:T(1,128)}', space=vmem, size = 0x9000, scoped, tag = 'internal scratch']
  #allocation2 [shape = 's32[1]{0}', space=sflag, size = 0x4, scoped, tag = 'scoped memory for tpu_custom_call.1']
  #allocation3 [shape = 'u8[512]{0}', space=smem, size = 0x200, scoped, tag = 'prefetched SMEM operand 0']
  #allocation4 [shape = 'u8[512]{0}', space=smem, size = 0x200, scoped, tag = 'prefetched SMEM operand 1']
  #allocation5 [shape = 'u8[512]{0}', space=smem, size = 0x200, scoped, tag = 'prefetched SMEM operand 2']
  #allocation6 [shape = 'u8[512]{0}', space=smem, size = 0x200, scoped, tag = 'prefetched SMEM operand 3']
  #allocation7 [shape = 'u8[512]{0}', space=smem, size = 0x200, scoped, tag = 'prefetched SMEM operand 4']
  #allocation8 [shape = 'f32[1]{0:T(128)S(6)}', space=smem, size = 0x200, scoped, tag = 'prefetched SMEM operand 5']
  %s0 = inlined_call_operand.vmem [shape: f32[20], index: 0, kind: input, shape index: {}]
  %s1 = inlined_call_operand.vmem [shape: f32[2], index: 1, kind: input, shape index: {}]
  %s2 = inlined_call_operand.vmem [shape: f32[4], index: 2, kind: input, shape index: {}]
  %s3 = inlined_call_operand.vmem [shape: f32[2], index: 3, kind: input, shape index: {}]
  %s4 = inlined_call_operand.vmem [shape: f32[2], index: 4, kind: input, shape index: {}]
  %s5 = inlined_call_operand.<no memory space> [shape: f32[1], index: 5, kind: input, shape index: {}]
  %s6 = inlined_call_operand.hbm [shape: f32[10,8,128], index: 6, kind: input, shape index: {}]
  %s7 = inlined_call_operand.hbm [shape: f32[8,128], index: 7, kind: output, shape index: {}]
  %s8 = sld [smem:[#allocation0]]
  $region18: #{tpu_custom_call.1} parent=0
    _
  %s10 = ssub.s32 1, %s8
  %s11 = scalar_select 0, %s10, %s8
  %s13 = sshll.u32 %s0, 4
  %s14 = int_to_ptr.vmem [resolvable:$true] %s13
  %16 = dma.vmem_to_smem %s14, 16, [#allocation3], [#allocation2]
  %s18 = sshll.u32 %s1, 4
  %s19 = int_to_ptr.vmem [resolvable:$true] %s18
  %21 = dma.vmem_to_smem %s19, 16, [#allocation4], [#allocation2]
  %s23 = sshll.u32 %s2, 4
  %s24 = int_to_ptr.vmem [resolvable:$true] %s23
  %26 = dma.vmem_to_smem %s24, 16, [#allocation5], [#allocation2]
  %s28 = sshll.u32 %s3, 4
  %s29 = int_to_ptr.vmem [resolvable:$true] %s28
  %31 = dma.vmem_to_smem %s29, 16, [#allocation6], [#allocation2]
  %s33 = sshll.u32 %s4, 4
  %s34 = int_to_ptr.vmem [resolvable:$true] %s33
  %36 = dma.vmem_to_smem %s34, 16, [#allocation7], [#allocation2]
  %37 = sst [smem:[#allocation8]] %s5
  %39 = dma.done [#allocation2], 80
  %40 = sfence
  $region1: #{tpu_custom_call.1} parent=0
    #allocation9 [shape = 'u8[40960]{0}', space=vmem, size = 0xa000, scoped, tag = 'input window, operand 6, single buffered']
    #allocation10 [shape = 's32[1]{0}', space=sflag, size = 0x4, scoped, tag = 'scoped memory for tpu_custom_call.1']
    #allocation11 [shape = 's32[1]{0}', space=sflag, size = 0x4, scoped, tag = 'scoped memory for tpu_custom_call.1']
    #allocation12 [shape = 'u8[4096]{0}', space=vmem, size = 0x1000, scoped, tag = 'output window, operand 0, single buffered']
    %41 = vsyncpa [#allocation10], 0
    %42 = vsyncpa [#allocation11], 0
    // Predicated region
    $region2: #{tpu_custom_call.1} parent=1 // pred_check
      _
    $region3: #{tpu_custom_call.1} parent=1 // pred_check_branch
      %44 = sbr.rel (0) target = $region5
    $region4: #{tpu_custom_call.1} parent=1 // pred_region
      %46 = vsyncadd [#allocation10], 0
      %s47 = sshll.u32 %s6, 4
      %s48 = int_to_ptr.hbm [resolvable:$true] %s47
      %s49 = sshll.u32 [#allocation9], 4
      %s50 = int_to_ptr.vmem [resolvable:$true] %s49
      %55 = dma.hbm_to_vmem [thread:$0]  %s48, 1280, %s50, [#allocation10], 128, 128, 8
    $region5: #{tpu_custom_call.1} parent=1 // pred_fallthru
      _
    // Predicated region
    $region6: #{tpu_custom_call.1} parent=1 // pred_check
      _
    $region7: #{tpu_custom_call.1} parent=1 // pred_check_branch
      %57 = sbr.rel (0) target = $region9
    $region8: #{tpu_custom_call.1} parent=1 // pred_region
      %59 = dma.done [#allocation10], 1280
    $region9: #{tpu_custom_call.1} parent=1 // pred_fallthru
      _
    %v60 = vld [vmem:[#allocation9] sm:$0xff]
    %s61 = scalar_lea.vmem [#allocation9], 8
    %v62 = vld [vmem:[%s61] sm:$0xff]
    %s63 = scalar_lea.vmem [#allocation9], 16
    %v64 = vld [vmem:[%s63] sm:$0xff]
    %s65 = scalar_lea.vmem [#allocation9], 24
    %v66 = vld [vmem:[%s65] sm:$0xff]
    %s67 = scalar_lea.vmem [#allocation9], 32
    %v68 = vld [vmem:[%s67] sm:$0xff]
    %s69 = scalar_lea.vmem [#allocation9], 40
    %v70 = vld [vmem:[%s69] sm:$0xff]
    %s71 = scalar_lea.vmem [#allocation9], 48
    %v72 = vld [vmem:[%s71] sm:$0xff]
    %s73 = scalar_lea.vmem [#allocation9], 56
    %v74 = vld [vmem:[%s73] sm:$0xff]
    %s75 = scalar_lea.vmem [#allocation9], 64
    %v76 = vld [vmem:[%s75] sm:$0xff]
    %s77 = scalar_lea.vmem [#allocation9], 72
    %v78 = vld [vmem:[%s77] sm:$0xff]
    %s79 = sld [smem:[#allocation3]]
    %v80 = vstv %s79
    %v81 = vmul.f32 %v60, %v80
    %s82 = sld [smem:[#allocation3 + $0x2]]
    %v83 = vstv %s82
    %v84 = vmul.f32 %v62, %v83
    %v85 = vadd.f32 %v81, %v84
    %s86 = sld [smem:[#allocation3 + $0x4]]
    %v87 = vstv %s86
    %v88 = vmul.f32 %v64, %v87
    %v89 = vadd.f32 %v85, %v88
    %s90 = sld [smem:[#allocation3 + $0x6]]
    %v91 = vstv %s90
    %v92 = vmul.f32 %v66, %v91
    %v93 = vadd.f32 %v89, %v92
    %s94 = sld [smem:[#allocation3 + $0x8]]
    %v95 = vstv %s94
    %v96 = vmul.f32 %v68, %v95
    %v97 = vadd.f32 %v93, %v96
    %s98 = sld [smem:[#allocation3 + $0xa]]
    %v99 = vstv %s98
    %v100 = vmul.f32 %v70, %v99
    %v101 = vadd.f32 %v97, %v100
    %s102 = sld [smem:[#allocation3 + $0xc]]
    %v103 = vstv %s102
    %v104 = vmul.f32 %v72, %v103
    %v105 = vadd.f32 %v101, %v104
    %s106 = sld [smem:[#allocation3 + $0xe]]
    %v107 = vstv %s106
    %v108 = vmul.f32 %v74, %v107
    %v109 = vadd.f32 %v105, %v108
    %s110 = sld [smem:[#allocation3 + $0x10]]
    %v111 = vstv %s110
    %v112 = vmul.f32 %v76, %v111
    %v113 = vadd.f32 %v109, %v112
    %s114 = sld [smem:[#allocation3 + $0x12]]
    %v115 = vstv %s114
    %v116 = vmul.f32 %v78, %v115
    %v117 = vadd.f32 %v113, %v116
    %s118 = sld [smem:[#allocation4]]
    %v119 = vstv %s118
    %v120 = vadd.f32 %v117, %v119
    %vm121 = vcmp.ge.f32.partialorder %v120, 0.0
    %v122 = vmul.f32 %v120, 0.01
    %v123 = vsel %vm121, %v120, %v122
    %s124 = sld [smem:[#allocation3 + $0x1]]
    %v125 = vstv %s124
    %v126 = vmul.f32 %v60, %v125
    %s127 = sld [smem:[#allocation3 + $0x3]]
    %v128 = vstv %s127
    %v129 = vmul.f32 %v62, %v128
    %v130 = vadd.f32 %v126, %v129
    %s131 = sld [smem:[#allocation3 + $0x5]]
    %v132 = vstv %s131
    %v133 = vmul.f32 %v64, %v132
    %v134 = vadd.f32 %v130, %v133
    %s135 = sld [smem:[#allocation3 + $0x7]]
    %v136 = vstv %s135
    %v137 = vmul.f32 %v66, %v136
    %v138 = vadd.f32 %v134, %v137
    %s139 = sld [smem:[#allocation3 + $0x9]]
    %v140 = vstv %s139
    %v141 = vmul.f32 %v68, %v140
    %v142 = vadd.f32 %v138, %v141
    %s143 = sld [smem:[#allocation3 + $0xb]]
    %v144 = vstv %s143
    %v145 = vmul.f32 %v70, %v144
    %v146 = vadd.f32 %v142, %v145
    %s147 = sld [smem:[#allocation3 + $0xd]]
    %v148 = vstv %s147
    %v149 = vmul.f32 %v72, %v148
    %v150 = vadd.f32 %v146, %v149
    %s151 = sld [smem:[#allocation3 + $0xf]]
    %v152 = vstv %s151
    %v153 = vmul.f32 %v74, %v152
    %v154 = vadd.f32 %v150, %v153
    %s155 = sld [smem:[#allocation3 + $0x11]]
    %v156 = vstv %s155
    %v157 = vmul.f32 %v76, %v156
    %v158 = vadd.f32 %v154, %v157
    %s159 = sld [smem:[#allocation3 + $0x13]]
    %v160 = vstv %s159
    %v161 = vmul.f32 %v78, %v160
    %v162 = vadd.f32 %v158, %v161
    %s163 = sld [smem:[#allocation4 + $0x1]]
    %v164 = vstv %s163
    %v165 = vadd.f32 %v162, %v164
    %vm166 = vcmp.ge.f32.partialorder %v165, 0.0
    %v167 = vmul.f32 %v165, 0.01
    %v168 = vsel %vm166, %v165, %v167
    %s169 = sld [smem:[#allocation5]]
    %v170 = vstv %s169
    %v171 = vmul.f32 %v123, %v170
    %s172 = sld [smem:[#allocation5 + $0x2]]
    %v173 = vstv %s172
    %v174 = vmul.f32 %v168, %v173
    %v175 = vadd.f32 %v171, %v174
    %s176 = sld [smem:[#allocation6]]
    %v177 = vstv %s176
    %v178 = vadd.f32 %v175, %v177
    %vm179 = vcmp.ge.f32.partialorder %v178, 0.0
    %v180 = vmul.f32 %v178, 0.01
    %v181 = vsel %vm179, %v178, %v180
    %s182 = sld [smem:[#allocation5 + $0x1]]
    %v183 = vstv %s182
    %v184 = vmul.f32 %v123, %v183
    %s185 = sld [smem:[#allocation5 + $0x3]]
    %v186 = vstv %s185
    %v187 = vmul.f32 %v168, %v186
    %v188 = vadd.f32 %v184, %v187
    %s189 = sld [smem:[#allocation6 + $0x1]]
    %v190 = vstv %s189
    %v191 = vadd.f32 %v188, %v190
    %vm192 = vcmp.ge.f32.partialorder %v191, 0.0
    %v193 = vmul.f32 %v191, 0.01
    %v194 = vsel %vm192, %v191, %v193
    %s195 = sld [smem:[#allocation7]]
    %v196 = vstv %s195
    %v197 = vmul.f32 %v181, %v196
    %s198 = sld [smem:[#allocation7 + $0x1]]
    %v199 = vstv %s198
    %v200 = vmul.f32 %v194, %v199
    %v201 = vadd.f32 %v197, %v200
    %s202 = sld [smem:[#allocation8]]
    %v203 = vstv %s202
    %v204 = vadd.f32 %v201, %v203
    %205 = vst [vmem:[#allocation12] sm:$0xff] %v204
    // Predicated region
    $region10: #{tpu_custom_call.1} parent=1 // pred_check
      _
    $region11: #{tpu_custom_call.1} parent=1 // pred_check_branch
      %207 = sbr.rel (0) target = $region13
    $region12: #{tpu_custom_call.1} parent=1 // pred_region
      %209 = vsyncadd [#allocation11], 0
      %s211 = sshll.u32 [#allocation12], 4
      %s212 = int_to_ptr.vmem [resolvable:$true] %s211
      %s213 = sshll.u32 %s7, 4
      %s214 = int_to_ptr.hbm [resolvable:$true] %s213
      %216 = dma.vmem_to_hbm [thread:$0]  %s212, 128, %s214, [#allocation11]
    $region13: #{tpu_custom_call.1} parent=1 // pred_fallthru
      _
    // Predicated region
    $region14: #{tpu_custom_call.1} parent=1 // pred_check
      _
    $region15: #{tpu_custom_call.1} parent=1 // pred_check_branch
      %218 = sbr.rel (0) target = $region17
    $region16: #{tpu_custom_call.1} parent=1 // pred_region
      %220 = dma.done [#allocation11], 128
    $region17: #{tpu_custom_call.1} parent=1 // pred_fallthru
      _
    %221 = vsyncpa [#allocation10], 1
    %222 = vsyncpa [#allocation11], 1

</llo_original>
